<compile_context>
chip_gen: v5e
topology: v5e:2x2
jax: 0.10.0
libtpu: 0.0.40
codegen_flags: <defaults>
</compile_context>

<pallas_src>
import jax
import jax.numpy as jnp
from jax.experimental import pallas as pl
from jax.experimental.pallas import tpu as pltpu


# ----------------------------------------------------------------------------
# Pallas kernel: one grid step processes TB batch elements as a (C, R) slab
# with R = TB*L lanes (channels in sublanes, flattened positions in lanes).
# ----------------------------------------------------------------------------
def cnn01_kernel(
    xi_ref,                      # (3*Cin, R)   im2col rows: k*Cin+c -> x[c, p+k]
    w1_ref,                      # (48, 3*Cin)  conv1 as a single matmul
    w2_ref, w3_ref,              # (3, 24, 48), (3, 12, 24)  conv taps
    wl1_ref, wl2_ref, wl3_ref,   # (96, 12), (48, 96), (24, 48)
    wl4_ref,                     # (24, 1)      final layer as a column
    b1_ref, b2_ref, b3_ref,      # (48, 1), (24, 1), (12, 1)
    bl1_ref, bl2_ref, bl3_ref,   # (96, 1), (48, 1), (24, 1)
    bl4_ref,                     # (1, 1)
    out_ref,                     # (1, 1, R)    lane-dense output row
):
    def mm(w, a):
        return jnp.dot(w, a, preferred_element_type=jnp.float32)

    def conv_taps(a, w_ref):
        # Valid conv along lanes: tap k reads position p+k via a lane rotation
        # (rotate by R-k == shift left by k).  Wrapped lanes only land in the
        # invalid tail of the last length-L block and are discarded later.
        R = a.shape[1]
        y = mm(w_ref[0], a)
        y = y + mm(w_ref[1], pltpu.roll(a, shift=R - 1, axis=1))
        y = y + mm(w_ref[2], pltpu.roll(a, shift=R - 2, axis=1))
        return y

    a = xi_ref[...]                                              # (12,  R)
    a = jnp.maximum(mm(w1_ref[...], a) + b1_ref[...], 0.0)       # (48,  R) conv1
    a = jnp.maximum(conv_taps(a, w2_ref) + b2_ref[...], 0.0)     # (24,  R) conv2
    a = jnp.maximum(conv_taps(a, w3_ref) + b3_ref[...], 0.0)     # (12,  R) conv3
    a = jnp.maximum(mm(wl1_ref[...], a) + bl1_ref[...], 0.0)     # (96,  R) l1
    a = jnp.maximum(mm(wl2_ref[...], a) + bl2_ref[...], 0.0)     # (48,  R) l2
    a = jnp.maximum(mm(wl3_ref[...], a) + bl3_ref[...], 0.0)     # (24,  R) l3
    # Linear(24 -> 1): VPU multiply + sublane (XLU) reduction, no M=1 matmul.
    y = jnp.sum(a * wl4_ref[...], axis=0, keepdims=True) + bl4_ref[...]  # (1, R)
    out_ref[...] = y[None].astype(out_ref.dtype)                 # (1, 1, R)


# ----------------------------------------------------------------------------
# Wrapper
# ----------------------------------------------------------------------------
def _round_up(n, m):
    return pl.cdiv(n, m) * m


def _choose_tb(B, L, max_rows=2048, target_rows=512):
    """Pick the batch tile.  When the grid has more than one step, TB*L must be
    a multiple of 128 (lane-dense blocks).  Minimise batch padding first, then
    prefer >=2 grid steps (v7x has 2 TensorCores), then R near target_rows."""
    best, best_key = B, None
    for tb in range(1, B + 1):
        grid = pl.cdiv(B, tb)
        rows = tb * L
        if grid > 1 and rows % 128 != 0:
            continue
        key = (max(0, rows - max_rows),            # avoid huge single blocks
               grid * tb - B,                      # batch padding (dead work)
               0 if (grid >= 2 or B == 1) else 1,  # keep both v7x cores busy
               abs(rows - target_rows))            # amortise per-step overhead
        if best_key is None or key < best_key:
            best, best_key = tb, key
    return best


def cnn01_forward(x, params):
    """x: (B, L, Cin) float32.  Returns the same result as CNN_01.forward."""
    B, L, Cin = x.shape
    Lo = L - 6                                   # three valid K=3 convs
    assert Lo >= 1, "sequence length must be at least 7"

    TB = _choose_tb(B, L)
    grid = pl.cdiv(B, TB)
    B_pad = grid * TB
    # Lane extent of one grid step; always a multiple of 128.
    R = TB * L if grid > 1 else _round_up(B_pad * L, 128)
    P = grid * R                                 # total (padded) flat length

    x_p = x if B_pad == B else jnp.pad(x, ((0, B_pad - B), (0, 0), (0, 0)))
    xt = x_p.astype(jnp.float32).reshape(B_pad * L, Cin).T       # (Cin, B_pad*L)
    if P != B_pad * L:
        xt = jnp.pad(xt, ((0, 0), (0, P - B_pad * L)))
    # im2col for conv1 (wrapper-side, essentially free): row k*Cin+c = x[c, p+k].
    xi = jnp.concatenate([jnp.roll(xt, -k, axis=1) for k in range(3)], axis=0)

    # Parameters in kernel layout (plain-JAX glue, outside the kernel).
    w1 = jnp.transpose(params["c1w"], (0, 2, 1)).reshape(48, 3 * Cin)
    w2 = jnp.transpose(params["c2w"], (2, 0, 1))                 # (3, 24, 48)
    w3 = jnp.transpose(params["c3w"], (2, 0, 1))                 # (3, 12, 24)
    wl1, wl2, wl3 = params["l1w"], params["l2w"], params["l3w"]  # native (out,in)
    wl4 = params["l4w"].T                                        # (24, 1)
    col = lambda b: b[:, None]
    consts = (w1, w2, w3, wl1, wl2, wl3, wl4,
              col(params["c1b"]), col(params["c2b"]), col(params["c3b"]),
              col(params["l1b"]), col(params["l2b"]), col(params["l3b"]),
              col(params["l4b"]))

    def full_spec(a):
        return pl.BlockSpec(a.shape, lambda b, _n=a.ndim: (0,) * _n)

    out = pl.pallas_call(
        cnn01_kernel,
        out_shape=jax.ShapeDtypeStruct((grid, 1, R), jnp.float32),
        grid_spec=pltpu.PrefetchScalarGridSpec(
            num_scalar_prefetch=0,
            grid=(grid,),
            in_specs=[pl.BlockSpec((3 * Cin, R), lambda b: (0, b))]
                     + [full_spec(c) for c in consts],
            out_specs=pl.BlockSpec((1, 1, R), lambda b: (b, 0, 0)),
        ),
        compiler_params=pltpu.CompilerParams(
            dimension_semantics=("parallel",)),
    )(xi, *consts)

    # (grid, 1, R) -> flat positions -> (B, Lo, 1); drop per-block invalid tails.
    y = out.reshape(grid * R)[: B_pad * L].reshape(B_pad, L)[:B, :Lo, None]
    # PyTorch's .squeeze(0): only drops the batch dim if it is 1.
    return jnp.squeeze(y, axis=0) if y.shape[0] == 1 else y


# ----------------------------------------------------------------------------
# Pure-JAX reference (mirrors the PyTorch module exactly) for validation.
# ----------------------------------------------------------------------------
def cnn01_reference(x, params):
    h = jnp.transpose(x, (0, 2, 1))  # (B, Cin, L)  == x.permute(0,2,1)
    for wk, bk in (("c1w", "c1b"), ("c2w", "c2b"), ("c3w", "c3b")):
        h = jax.lax.conv_general_dilated(
            h, params[wk], window_strides=(1,), padding="VALID",
            dimension_numbers=("NCH", "OIH", "NCH"))
        h = jnp.maximum(h + params[bk][None, :, None], 0.0)
    h = jnp.transpose(h, (0, 2, 1))  # (B, L-6, 12)
    h = jnp.maximum(h @ params["l1w"].T + params["l1b"], 0.0)
    h = jnp.maximum(h @ params["l2w"].T + params["l2b"], 0.0)
    h = jnp.maximum(h @ params["l3w"].T + params["l3b"], 0.0)
    h = h @ params["l4w"].T + params["l4b"]
    return jnp.squeeze(h, axis=0) if h.shape[0] == 1 else h


# ----------------------------------------------------------------------------
# Deterministic parameter init (PyTorch-style uniform(+-1/sqrt(fan_in))).
# ----------------------------------------------------------------------------
def init_params(key, input_size):
    def uni(k, shape, fan_in):
        bound = 1.0 / jnp.sqrt(jnp.float32(fan_in))
        return jax.random.uniform(k, shape, jnp.float32, -bound, bound)

    ks = jax.random.split(key, 14)
    p = {}
    # conv weights in PyTorch layout (Cout, Cin, K)
    p["c1w"] = uni(ks[0], (48, input_size, 3), input_size * 3)
    p["c1b"] = uni(ks[1], (48,), input_size * 3)
    p["c2w"] = uni(ks[2], (24, 48, 3), 48 * 3)
    p["c2b"] = uni(ks[3], (24,), 48 * 3)
    p["c3w"] = uni(ks[4], (12, 24, 3), 24 * 3)
    p["c3b"] = uni(ks[5], (12,), 24 * 3)
    # linear weights in PyTorch layout (out, in)
    p["l1w"] = uni(ks[6], (96, 12), 12);  p["l1b"] = uni(ks[7], (96,), 12)
    p["l2w"] = uni(ks[8], (48, 96), 96);  p["l2b"] = uni(ks[9], (48,), 96)
    p["l3w"] = uni(ks[10], (24, 48), 48); p["l3b"] = uni(ks[11], (24,), 48)
    p["l4w"] = uni(ks[12], (1, 24), 24);  p["l4b"] = uni(ks[13], (1,), 24)
    return p


if __name__ == "__main__":
    key = jax.random.PRNGKey(0)
    k_x, k_p = jax.random.split(key)

    B, L, INPUT_SIZE = 2, 16, 4          # x: (batch, seq, features)
    x = jax.random.normal(k_x, (B, L, INPUT_SIZE), jnp.float32)
    params = init_params(k_p, INPUT_SIZE)

    out = jax.block_until_ready(cnn01_forward(x, params))
    ref = jax.block_until_ready(cnn01_reference(x, params))

    assert out.shape == (B, L - 6, 1), out.shape
    assert jnp.allclose(out, ref, rtol=1e-4, atol=1e-4), (
        float(jnp.max(jnp.abs(out - ref))))
    print("KERNEL_OK")
</pallas_src>

<mosaic_0001>
module attributes {stable_mosaic.version = 11 : i64} {
  func.func @cnn01_kernel(%arg0: i32, %arg1: memref<12x128xf32, #tpu.memory_space<vmem>>, %arg2: memref<48x12xf32, #tpu.memory_space<vmem>>, %arg3: memref<3x24x48xf32, #tpu.memory_space<vmem>>, %arg4: memref<3x12x24xf32, #tpu.memory_space<vmem>>, %arg5: memref<96x12xf32, #tpu.memory_space<vmem>>, %arg6: memref<48x96xf32, #tpu.memory_space<vmem>>, %arg7: memref<24x48xf32, #tpu.memory_space<vmem>>, %arg8: memref<24x1xf32, #tpu.memory_space<vmem>>, %arg9: memref<48x1xf32, #tpu.memory_space<vmem>>, %arg10: memref<24x1xf32, #tpu.memory_space<vmem>>, %arg11: memref<12x1xf32, #tpu.memory_space<vmem>>, %arg12: memref<96x1xf32, #tpu.memory_space<vmem>>, %arg13: memref<48x1xf32, #tpu.memory_space<vmem>>, %arg14: memref<24x1xf32, #tpu.memory_space<vmem>>, %arg15: memref<1x1xf32, #tpu.memory_space<vmem>>, %arg16: memref<1x1x128xf32, #tpu.memory_space<vmem>>) attributes {dimension_semantics = [#tpu.dimension_semantics<parallel>], iteration_bounds = array<i64: 1>, scalar_prefetch = 0 : i64, scratch_operands = 0 : i64, tpu.core_type = #tpu.core_type<tc>, window_params = [{transform_indices = @transform_0, window_bounds = array<i64: 12, 128>}, {pipeline_mode = #tpu.pipeline_mode<synchronous>, transform_indices = @transform_1, window_bounds = array<i64: 48, 12>}, {pipeline_mode = #tpu.pipeline_mode<synchronous>, transform_indices = @transform_2, window_bounds = array<i64: 3, 24, 48>}, {pipeline_mode = #tpu.pipeline_mode<synchronous>, transform_indices = @transform_3, window_bounds = array<i64: 3, 12, 24>}, {pipeline_mode = #tpu.pipeline_mode<synchronous>, transform_indices = @transform_4, window_bounds = array<i64: 96, 12>}, {pipeline_mode = #tpu.pipeline_mode<synchronous>, transform_indices = @transform_5, window_bounds = array<i64: 48, 96>}, {pipeline_mode = #tpu.pipeline_mode<synchronous>, transform_indices = @transform_6, window_bounds = array<i64: 24, 48>}, {pipeline_mode = #tpu.pipeline_mode<synchronous>, transform_indices = @transform_7, window_bounds = array<i64: 24, 1>}, {pipeline_mode = #tpu.pipeline_mode<synchronous>, transform_indices = @transform_8, window_bounds = array<i64: 48, 1>}, {pipeline_mode = #tpu.pipeline_mode<synchronous>, transform_indices = @transform_9, window_bounds = array<i64: 24, 1>}, {pipeline_mode = #tpu.pipeline_mode<synchronous>, transform_indices = @transform_10, window_bounds = array<i64: 12, 1>}, {pipeline_mode = #tpu.pipeline_mode<synchronous>, transform_indices = @transform_11, window_bounds = array<i64: 96, 1>}, {pipeline_mode = #tpu.pipeline_mode<synchronous>, transform_indices = @transform_12, window_bounds = array<i64: 48, 1>}, {pipeline_mode = #tpu.pipeline_mode<synchronous>, transform_indices = @transform_13, window_bounds = array<i64: 24, 1>}, {pipeline_mode = #tpu.pipeline_mode<synchronous>, transform_indices = @transform_14, window_bounds = array<i64: 1, 1>}, {transform_indices = @transform_15, window_bounds = array<i64: 1, 1, 128>}]} {
    %c0 = arith.constant 0 : index
    %c0_0 = arith.constant 0 : index
    %0 = vector.load %arg1[%c0, %c0_0] : memref<12x128xf32, #tpu.memory_space<vmem>>, vector<12x128xf32>
    %c0_1 = arith.constant 0 : index
    %c0_2 = arith.constant 0 : index
    %1 = vector.load %arg2[%c0_1, %c0_2] : memref<48x12xf32, #tpu.memory_space<vmem>>, vector<48x12xf32>
    %cst = arith.constant dense<0.000000e+00> : vector<48x128xf32>
    %2 = tpu.matmul %1, %0, %cst {dimension_numbers = #tpu.dot_dimension_numbers<[1], [0], [0], [1], [0, 0, 1, 1], [], []>} : vector<48x12xf32>, vector<12x128xf32>, vector<48x128xf32> -> vector<48x128xf32>
    %c0_3 = arith.constant 0 : index
    %c0_4 = arith.constant 0 : index
    %3 = vector.load %arg9[%c0_3, %c0_4] : memref<48x1xf32, #tpu.memory_space<vmem>>, vector<48x1xf32>
    %4 = vector.broadcast %3 : vector<48x1xf32> to vector<48x128xf32>
    %5 = arith.addf %2, %4 : vector<48x128xf32>
    %cst_5 = arith.constant 0.000000e+00 : f32
    %6 = vector.broadcast %cst_5 : f32 to vector<48x128xf32>
    %7 = arith.maximumf %5, %6 : vector<48x128xf32>
    %c0_6 = arith.constant 0 : index
    %c0_7 = arith.constant 0 : index
    %c0_8 = arith.constant 0 : index
    %8 = vector.load %arg3[%c0_6, %c0_7, %c0_8] : memref<3x24x48xf32, #tpu.memory_space<vmem>>, vector<1x24x48xf32>
    %9 = vector.shape_cast %8 : vector<1x24x48xf32> to vector<24x48xf32>
    %cst_9 = arith.constant dense<0.000000e+00> : vector<24x128xf32>
    %10 = tpu.matmul %9, %7, %cst_9 {dimension_numbers = #tpu.dot_dimension_numbers<[1], [0], [0], [1], [0, 0, 1, 1], [], []>} : vector<24x48xf32>, vector<48x128xf32>, vector<24x128xf32> -> vector<24x128xf32>
    %c1 = arith.constant 1 : index
    %c0_10 = arith.constant 0 : index
    %c0_11 = arith.constant 0 : index
    %11 = vector.load %arg3[%c1, %c0_10, %c0_11] : memref<3x24x48xf32, #tpu.memory_space<vmem>>, vector<1x24x48xf32>
    %12 = vector.shape_cast %11 : vector<1x24x48xf32> to vector<24x48xf32>
    %c127_i32 = arith.constant 127 : i32
    %13 = tpu.dynamic_rotate %7 by %c127_i32 dim 1 : vector<48x128xf32>, i32 -> vector<48x128xf32>
    %cst_12 = arith.constant dense<0.000000e+00> : vector<24x128xf32>
    %14 = tpu.matmul %12, %13, %cst_12 {dimension_numbers = #tpu.dot_dimension_numbers<[1], [0], [0], [1], [0, 0, 1, 1], [], []>} : vector<24x48xf32>, vector<48x128xf32>, vector<24x128xf32> -> vector<24x128xf32>
    %15 = arith.addf %10, %14 : vector<24x128xf32>
    %c2 = arith.constant 2 : index
    %c0_13 = arith.constant 0 : index
    %c0_14 = arith.constant 0 : index
    %16 = vector.load %arg3[%c2, %c0_13, %c0_14] : memref<3x24x48xf32, #tpu.memory_space<vmem>>, vector<1x24x48xf32>
    %17 = vector.shape_cast %16 : vector<1x24x48xf32> to vector<24x48xf32>
    %c126_i32 = arith.constant 126 : i32
    %18 = tpu.dynamic_rotate %7 by %c126_i32 dim 1 : vector<48x128xf32>, i32 -> vector<48x128xf32>
    %cst_15 = arith.constant dense<0.000000e+00> : vector<24x128xf32>
    %19 = tpu.matmul %17, %18, %cst_15 {dimension_numbers = #tpu.dot_dimension_numbers<[1], [0], [0], [1], [0, 0, 1, 1], [], []>} : vector<24x48xf32>, vector<48x128xf32>, vector<24x128xf32> -> vector<24x128xf32>
    %20 = arith.addf %15, %19 : vector<24x128xf32>
    %c0_16 = arith.constant 0 : index
    %c0_17 = arith.constant 0 : index
    %21 = vector.load %arg10[%c0_16, %c0_17] : memref<24x1xf32, #tpu.memory_space<vmem>>, vector<24x1xf32>
    %22 = vector.broadcast %21 : vector<24x1xf32> to vector<24x128xf32>
    %23 = arith.addf %20, %22 : vector<24x128xf32>
    %cst_18 = arith.constant 0.000000e+00 : f32
    %24 = vector.broadcast %cst_18 : f32 to vector<24x128xf32>
    %25 = arith.maximumf %23, %24 : vector<24x128xf32>
    %c0_19 = arith.constant 0 : index
    %c0_20 = arith.constant 0 : index
    %c0_21 = arith.constant 0 : index
    %26 = vector.load %arg4[%c0_19, %c0_20, %c0_21] : memref<3x12x24xf32, #tpu.memory_space<vmem>>, vector<1x12x24xf32>
    %27 = vector.shape_cast %26 : vector<1x12x24xf32> to vector<12x24xf32>
    %cst_22 = arith.constant dense<0.000000e+00> : vector<12x128xf32>
    %28 = tpu.matmul %27, %25, %cst_22 {dimension_numbers = #tpu.dot_dimension_numbers<[1], [0], [0], [1], [0, 0, 1, 1], [], []>} : vector<12x24xf32>, vector<24x128xf32>, vector<12x128xf32> -> vector<12x128xf32>
    %c1_23 = arith.constant 1 : index
    %c0_24 = arith.constant 0 : index
    %c0_25 = arith.constant 0 : index
    %29 = vector.load %arg4[%c1_23, %c0_24, %c0_25] : memref<3x12x24xf32, #tpu.memory_space<vmem>>, vector<1x12x24xf32>
    %30 = vector.shape_cast %29 : vector<1x12x24xf32> to vector<12x24xf32>
    %c127_i32_26 = arith.constant 127 : i32
    %31 = tpu.dynamic_rotate %25 by %c127_i32_26 dim 1 : vector<24x128xf32>, i32 -> vector<24x128xf32>
    %cst_27 = arith.constant dense<0.000000e+00> : vector<12x128xf32>
    %32 = tpu.matmul %30, %31, %cst_27 {dimension_numbers = #tpu.dot_dimension_numbers<[1], [0], [0], [1], [0, 0, 1, 1], [], []>} : vector<12x24xf32>, vector<24x128xf32>, vector<12x128xf32> -> vector<12x128xf32>
    %33 = arith.addf %28, %32 : vector<12x128xf32>
    %c2_28 = arith.constant 2 : index
    %c0_29 = arith.constant 0 : index
    %c0_30 = arith.constant 0 : index
    %34 = vector.load %arg4[%c2_28, %c0_29, %c0_30] : memref<3x12x24xf32, #tpu.memory_space<vmem>>, vector<1x12x24xf32>
    %35 = vector.shape_cast %34 : vector<1x12x24xf32> to vector<12x24xf32>
    %c126_i32_31 = arith.constant 126 : i32
    %36 = tpu.dynamic_rotate %25 by %c126_i32_31 dim 1 : vector<24x128xf32>, i32 -> vector<24x128xf32>
    %cst_32 = arith.constant dense<0.000000e+00> : vector<12x128xf32>
    %37 = tpu.matmul %35, %36, %cst_32 {dimension_numbers = #tpu.dot_dimension_numbers<[1], [0], [0], [1], [0, 0, 1, 1], [], []>} : vector<12x24xf32>, vector<24x128xf32>, vector<12x128xf32> -> vector<12x128xf32>
    %38 = arith.addf %33, %37 : vector<12x128xf32>
    %c0_33 = arith.constant 0 : index
    %c0_34 = arith.constant 0 : index
    %39 = vector.load %arg11[%c0_33, %c0_34] : memref<12x1xf32, #tpu.memory_space<vmem>>, vector<12x1xf32>
    %40 = vector.broadcast %39 : vector<12x1xf32> to vector<12x128xf32>
    %41 = arith.addf %38, %40 : vector<12x128xf32>
    %cst_35 = arith.constant 0.000000e+00 : f32
    %42 = vector.broadcast %cst_35 : f32 to vector<12x128xf32>
    %43 = arith.maximumf %41, %42 : vector<12x128xf32>
    %c0_36 = arith.constant 0 : index
    %c0_37 = arith.constant 0 : index
    %44 = vector.load %arg5[%c0_36, %c0_37] : memref<96x12xf32, #tpu.memory_space<vmem>>, vector<96x12xf32>
    %cst_38 = arith.constant dense<0.000000e+00> : vector<96x128xf32>
    %45 = tpu.matmul %44, %43, %cst_38 {dimension_numbers = #tpu.dot_dimension_numbers<[1], [0], [0], [1], [0, 0, 1, 1], [], []>} : vector<96x12xf32>, vector<12x128xf32>, vector<96x128xf32> -> vector<96x128xf32>
    %c0_39 = arith.constant 0 : index
    %c0_40 = arith.constant 0 : index
    %46 = vector.load %arg12[%c0_39, %c0_40] : memref<96x1xf32, #tpu.memory_space<vmem>>, vector<96x1xf32>
    %47 = vector.broadcast %46 : vector<96x1xf32> to vector<96x128xf32>
    %48 = arith.addf %45, %47 : vector<96x128xf32>
    %cst_41 = arith.constant 0.000000e+00 : f32
    %49 = vector.broadcast %cst_41 : f32 to vector<96x128xf32>
    %50 = arith.maximumf %48, %49 : vector<96x128xf32>
    %c0_42 = arith.constant 0 : index
    %c0_43 = arith.constant 0 : index
    %51 = vector.load %arg6[%c0_42, %c0_43] : memref<48x96xf32, #tpu.memory_space<vmem>>, vector<48x96xf32>
    %cst_44 = arith.constant dense<0.000000e+00> : vector<48x128xf32>
    %52 = tpu.matmul %51, %50, %cst_44 {dimension_numbers = #tpu.dot_dimension_numbers<[1], [0], [0], [1], [0, 0, 1, 1], [], []>} : vector<48x96xf32>, vector<96x128xf32>, vector<48x128xf32> -> vector<48x128xf32>
    %c0_45 = arith.constant 0 : index
    %c0_46 = arith.constant 0 : index
    %53 = vector.load %arg13[%c0_45, %c0_46] : memref<48x1xf32, #tpu.memory_space<vmem>>, vector<48x1xf32>
    %54 = vector.broadcast %53 : vector<48x1xf32> to vector<48x128xf32>
    %55 = arith.addf %52, %54 : vector<48x128xf32>
    %cst_47 = arith.constant 0.000000e+00 : f32
    %56 = vector.broadcast %cst_47 : f32 to vector<48x128xf32>
    %57 = arith.maximumf %55, %56 : vector<48x128xf32>
    %c0_48 = arith.constant 0 : index
    %c0_49 = arith.constant 0 : index
    %58 = vector.load %arg7[%c0_48, %c0_49] : memref<24x48xf32, #tpu.memory_space<vmem>>, vector<24x48xf32>
    %cst_50 = arith.constant dense<0.000000e+00> : vector<24x128xf32>
    %59 = tpu.matmul %58, %57, %cst_50 {dimension_numbers = #tpu.dot_dimension_numbers<[1], [0], [0], [1], [0, 0, 1, 1], [], []>} : vector<24x48xf32>, vector<48x128xf32>, vector<24x128xf32> -> vector<24x128xf32>
    %c0_51 = arith.constant 0 : index
    %c0_52 = arith.constant 0 : index
    %60 = vector.load %arg14[%c0_51, %c0_52] : memref<24x1xf32, #tpu.memory_space<vmem>>, vector<24x1xf32>
    %61 = vector.broadcast %60 : vector<24x1xf32> to vector<24x128xf32>
    %62 = arith.addf %59, %61 : vector<24x128xf32>
    %cst_53 = arith.constant 0.000000e+00 : f32
    %63 = vector.broadcast %cst_53 : f32 to vector<24x128xf32>
    %64 = arith.maximumf %62, %63 : vector<24x128xf32>
    %c0_54 = arith.constant 0 : index
    %c0_55 = arith.constant 0 : index
    %65 = vector.load %arg8[%c0_54, %c0_55] : memref<24x1xf32, #tpu.memory_space<vmem>>, vector<24x1xf32>
    %66 = vector.broadcast %65 : vector<24x1xf32> to vector<24x128xf32>
    %67 = arith.mulf %64, %66 : vector<24x128xf32>
    %cst_56 = arith.constant dense<0.000000e+00> : vector<128xf32>
    %68 = vector.multi_reduction <add>, %67, %cst_56 [0] : vector<24x128xf32> to vector<128xf32>
    %69 = vector.shape_cast %68 : vector<128xf32> to vector<1x128xf32>
    %c0_57 = arith.constant 0 : index
    %c0_58 = arith.constant 0 : index
    %70 = vector.load %arg15[%c0_57, %c0_58] : memref<1x1xf32, #tpu.memory_space<vmem>>, vector<1x1xf32>
    %71 = vector.broadcast %70 : vector<1x1xf32> to vector<1x128xf32>
    %72 = arith.addf %69, %71 : vector<1x128xf32>
    %73 = vector.shape_cast %72 : vector<1x128xf32> to vector<1x1x128xf32>
    %c0_59 = arith.constant 0 : index
    %c0_60 = arith.constant 0 : index
    %c0_61 = arith.constant 0 : index
    %74 = vector.load %arg16[%c0_59, %c0_60, %c0_61] : memref<1x1x128xf32, #tpu.memory_space<vmem>>, vector<1x1x128xf32>
    tpu.vector_store %arg16[%c0_59, %c0_60, %c0_61], %73 {strides = array<i32>} : memref<1x1x128xf32, #tpu.memory_space<vmem>>, vector<1x1x128xf32>,
    return
  }
  func.func @transform_0(%arg0: i32) -> (i32, i32) {
    %c0_i32 = arith.constant 0 : i32
    %c0_i32_0 = arith.constant 0 : i32
    return %c0_i32, %arg0 : i32, i32
  }
  func.func @transform_1(%arg0: i32) -> (i32, i32) {
    %c0_i32 = arith.constant 0 : i32
    %c0_i32_0 = arith.constant 0 : i32
    %c0_i32_1 = arith.constant 0 : i32
    return %c0_i32, %c0_i32_0 : i32, i32
  }
  func.func @transform_2(%arg0: i32) -> (i32, i32, i32) {
    %c0_i32 = arith.constant 0 : i32
    %c0_i32_0 = arith.constant 0 : i32
    %c0_i32_1 = arith.constant 0 : i32
    %c0_i32_2 = arith.constant 0 : i32
    return %c0_i32, %c0_i32_0, %c0_i32_1 : i32, i32, i32
  }
  func.func @transform_3(%arg0: i32) -> (i32, i32, i32) {
    %c0_i32 = arith.constant 0 : i32
    %c0_i32_0 = arith.constant 0 : i32
    %c0_i32_1 = arith.constant 0 : i32
    %c0_i32_2 = arith.constant 0 : i32
    return %c0_i32, %c0_i32_0, %c0_i32_1 : i32, i32, i32
  }
  func.func @transform_4(%arg0: i32) -> (i32, i32) {
    %c0_i32 = arith.constant 0 : i32
    %c0_i32_0 = arith.constant 0 : i32
    %c0_i32_1 = arith.constant 0 : i32
    return %c0_i32, %c0_i32_0 : i32, i32
  }
  func.func @transform_5(%arg0: i32) -> (i32, i32) {
    %c0_i32 = arith.constant 0 : i32
    %c0_i32_0 = arith.constant 0 : i32
    %c0_i32_1 = arith.constant 0 : i32
    return %c0_i32, %c0_i32_0 : i32, i32
  }
  func.func @transform_6(%arg0: i32) -> (i32, i32) {
    %c0_i32 = arith.constant 0 : i32
    %c0_i32_0 = arith.constant 0 : i32
    %c0_i32_1 = arith.constant 0 : i32
    return %c0_i32, %c0_i32_0 : i32, i32
  }
  func.func @transform_7(%arg0: i32) -> (i32, i32) {
    %c0_i32 = arith.constant 0 : i32
    %c0_i32_0 = arith.constant 0 : i32
    %c0_i32_1 = arith.constant 0 : i32
    return %c0_i32, %c0_i32_0 : i32, i32
  }
  func.func @transform_8(%arg0: i32) -> (i32, i32) {
    %c0_i32 = arith.constant 0 : i32
    %c0_i32_0 = arith.constant 0 : i32
    %c0_i32_1 = arith.constant 0 : i32
    return %c0_i32, %c0_i32_0 : i32, i32
  }
  func.func @transform_9(%arg0: i32) -> (i32, i32) {
    %c0_i32 = arith.constant 0 : i32
    %c0_i32_0 = arith.constant 0 : i32
    %c0_i32_1 = arith.constant 0 : i32
    return %c0_i32, %c0_i32_0 : i32, i32
  }
  func.func @transform_10(%arg0: i32) -> (i32, i32) {
    %c0_i32 = arith.constant 0 : i32
    %c0_i32_0 = arith.constant 0 : i32
    %c0_i32_1 = arith.constant 0 : i32
    return %c0_i32, %c0_i32_0 : i32, i32
  }
  func.func @transform_11(%arg0: i32) -> (i32, i32) {
    %c0_i32 = arith.constant 0 : i32
    %c0_i32_0 = arith.constant 0 : i32
    %c0_i32_1 = arith.constant 0 : i32
    return %c0_i32, %c0_i32_0 : i32, i32
  }
  func.func @transform_12(%arg0: i32) -> (i32, i32) {
    %c0_i32 = arith.constant 0 : i32
    %c0_i32_0 = arith.constant 0 : i32
    %c0_i32_1 = arith.constant 0 : i32
    return %c0_i32, %c0_i32_0 : i32, i32
  }
  func.func @transform_13(%arg0: i32) -> (i32, i32) {
    %c0_i32 = arith.constant 0 : i32
    %c0_i32_0 = arith.constant 0 : i32
    %c0_i32_1 = arith.constant 0 : i32
    return %c0_i32, %c0_i32_0 : i32, i32
  }
  func.func @transform_14(%arg0: i32) -> (i32, i32) {
    %c0_i32 = arith.constant 0 : i32
    %c0_i32_0 = arith.constant 0 : i32
    %c0_i32_1 = arith.constant 0 : i32
    return %c0_i32, %c0_i32_0 : i32, i32
  }
  func.func @transform_15(%arg0: i32) -> (i32, i32, i32) {
    %c0_i32 = arith.constant 0 : i32
    %c0_i32_0 = arith.constant 0 : i32
    %c0_i32_1 = arith.constant 0 : i32
    return %arg0, %c0_i32, %c0_i32_0 : i32, i32, i32
  }
}

</mosaic_0001>

<llo_original>
// kernel: tpu_custom_call.1
$region0: #{tpu_custom_call.1}
  #allocation0 [shape = 'u32[]', space=smem, size = 0x4, offset = 0x4, fixed_abs, tag = 'smem constant byte address 0x4 - core index']
  #allocation1 [shape = 'u32[72,128]{1,0:T(1,128)}', space=vmem, size = 0x9000, scoped, tag = 'internal scratch']
  #allocation2 [shape = 'f32[1,1]{1,0:T(1,128)S(1)}', space=vmem, size = 0x200, scoped, tag = 'scoped memory for tpu_custom_call.1']
  %s0 = inlined_call_operand.vmem [shape: f32[12,128], index: 0, kind: input, shape index: {}]
  %s1 = inlined_call_operand.vmem [shape: f32[48,12], index: 1, kind: input, shape index: {}]
  %s2 = inlined_call_operand.vmem [shape: f32[3,24,48], index: 2, kind: input, shape index: {}]
  %s3 = inlined_call_operand.vmem [shape: f32[3,12,24], index: 3, kind: input, shape index: {}]
  %s4 = inlined_call_operand.vmem [shape: f32[96,12], index: 4, kind: input, shape index: {}]
  %s5 = inlined_call_operand.vmem [shape: f32[48,96], index: 5, kind: input, shape index: {}]
  %s6 = inlined_call_operand.vmem [shape: f32[24,48], index: 6, kind: input, shape index: {}]
  %s7 = inlined_call_operand.vmem [shape: f32[24,1], index: 7, kind: input, shape index: {}]
  %s8 = inlined_call_operand.vmem [shape: f32[48,1], index: 8, kind: input, shape index: {}]
  %s9 = inlined_call_operand.vmem [shape: f32[24,1], index: 9, kind: input, shape index: {}]
  %s10 = inlined_call_operand.vmem [shape: f32[12,1], index: 10, kind: input, shape index: {}]
  %s11 = inlined_call_operand.vmem [shape: f32[96,1], index: 11, kind: input, shape index: {}]
  %s12 = inlined_call_operand.vmem [shape: f32[48,1], index: 12, kind: input, shape index: {}]
  %s13 = inlined_call_operand.vmem [shape: f32[24,1], index: 13, kind: input, shape index: {}]
  %s14 = inlined_call_operand.<no memory space> [shape: f32[1,1], index: 14, kind: input, shape index: {}]
  %s15 = inlined_call_operand.hbm [shape: f32[1,1,128], index: 15, kind: output, shape index: {}]
  %s16 = sld [smem:[#allocation0]]
  $region70: #{tpu_custom_call.1} parent=0
    _
  %s18 = ssub.s32 1, %s16
  %s19 = scalar_select 0, %s18, %s16
  %v20 = vstv %s14
  %21 = vst [vmem:[#allocation2] sm:$0x1] %v20
  $region1: #{tpu_custom_call.1} parent=0
    #allocation3 [shape = 'u8[512]{0}', space=vmem, size = 0x400, scoped, tag = 'output window, operand 0, single buffered']
    #allocation4 [shape = 's32[1]{0}', space=sflag, size = 0x4, scoped, tag = 'scoped memory for tpu_custom_call.1']
    %22 = vsyncpa [#allocation4], 0
    // Predicated region
    $region2: #{tpu_custom_call.1} parent=1 // pred_check
      _
    $region3: #{tpu_custom_call.1} parent=1 // pred_check_branch
      %24 = sbr.rel (0) target = $region5
    $region4: #{tpu_custom_call.1} parent=1 // pred_region
      _
    $region5: #{tpu_custom_call.1} parent=1 // pred_fallthru
      _
    // Predicated region
    $region6: #{tpu_custom_call.1} parent=1 // pred_check
      _
    $region7: #{tpu_custom_call.1} parent=1 // pred_check_branch
      %26 = sbr.rel (0) target = $region9
    $region8: #{tpu_custom_call.1} parent=1 // pred_region
      _
    $region9: #{tpu_custom_call.1} parent=1 // pred_fallthru
      _
    // Predicated region
    $region10: #{tpu_custom_call.1} parent=1 // pred_check
      _
    $region11: #{tpu_custom_call.1} parent=1 // pred_check_branch
      %28 = sbr.rel (0) target = $region13
    $region12: #{tpu_custom_call.1} parent=1 // pred_region
      _
    $region13: #{tpu_custom_call.1} parent=1 // pred_fallthru
      _
    // Predicated region
    $region14: #{tpu_custom_call.1} parent=1 // pred_check
      _
    $region15: #{tpu_custom_call.1} parent=1 // pred_check_branch
      %30 = sbr.rel (0) target = $region17
    $region16: #{tpu_custom_call.1} parent=1 // pred_region
      _
    $region17: #{tpu_custom_call.1} parent=1 // pred_fallthru
      _
    // Predicated region
    $region18: #{tpu_custom_call.1} parent=1 // pred_check
      _
    $region19: #{tpu_custom_call.1} parent=1 // pred_check_branch
      %32 = sbr.rel (0) target = $region21
    $region20: #{tpu_custom_call.1} parent=1 // pred_region
      _
    $region21: #{tpu_custom_call.1} parent=1 // pred_fallthru
      _
    // Predicated region
    $region22: #{tpu_custom_call.1} parent=1 // pred_check
      _
    $region23: #{tpu_custom_call.1} parent=1 // pred_check_branch
      %34 = sbr.rel (0) target = $region25
    $region24: #{tpu_custom_call.1} parent=1 // pred_region
      _
    $region25: #{tpu_custom_call.1} parent=1 // pred_fallthru
      _
    // Predicated region
    $region26: #{tpu_custom_call.1} parent=1 // pred_check
      _
    $region27: #{tpu_custom_call.1} parent=1 // pred_check_branch
      %36 = sbr.rel (0) target = $region29
    $region28: #{tpu_custom_call.1} parent=1 // pred_region
      _
    $region29: #{tpu_custom_call.1} parent=1 // pred_fallthru
      _
    // Predicated region
    $region30: #{tpu_custom_call.1} parent=1 // pred_check
      _
    $region31: #{tpu_custom_call.1} parent=1 // pred_check_branch
      %38 = sbr.rel (0) target = $region33
    $region32: #{tpu_custom_call.1} parent=1 // pred_region
      _
    $region33: #{tpu_custom_call.1} parent=1 // pred_fallthru
      _
    // Predicated region
    $region34: #{tpu_custom_call.1} parent=1 // pred_check
      _
    $region35: #{tpu_custom_call.1} parent=1 // pred_check_branch
      %40 = sbr.rel (0) target = $region37
    $region36: #{tpu_custom_call.1} parent=1 // pred_region
      _
    $region37: #{tpu_custom_call.1} parent=1 // pred_fallthru
      _
    // Predicated region
    $region38: #{tpu_custom_call.1} parent=1 // pred_check
      _
    $region39: #{tpu_custom_call.1} parent=1 // pred_check_branch
      %42 = sbr.rel (0) target = $region41
    $region40: #{tpu_custom_call.1} parent=1 // pred_region
      _
    $region41: #{tpu_custom_call.1} parent=1 // pred_fallthru
      _
    // Predicated region
    $region42: #{tpu_custom_call.1} parent=1 // pred_check
      _
    $region43: #{tpu_custom_call.1} parent=1 // pred_check_branch
      %44 = sbr.rel (0) target = $region45
    $region44: #{tpu_custom_call.1} parent=1 // pred_region
      _
    $region45: #{tpu_custom_call.1} parent=1 // pred_fallthru
      _
    // Predicated region
    $region46: #{tpu_custom_call.1} parent=1 // pred_check
      _
    $region47: #{tpu_custom_call.1} parent=1 // pred_check_branch
      %46 = sbr.rel (0) target = $region49
    $region48: #{tpu_custom_call.1} parent=1 // pred_region
      _
    $region49: #{tpu_custom_call.1} parent=1 // pred_fallthru
      _
    // Predicated region
    $region50: #{tpu_custom_call.1} parent=1 // pred_check
      _
    $region51: #{tpu_custom_call.1} parent=1 // pred_check_branch
      %48 = sbr.rel (0) target = $region53
    $region52: #{tpu_custom_call.1} parent=1 // pred_region
      _
    $region53: #{tpu_custom_call.1} parent=1 // pred_fallthru
      _
    // Predicated region
    $region54: #{tpu_custom_call.1} parent=1 // pred_check
      _
    $region55: #{tpu_custom_call.1} parent=1 // pred_check_branch
      %50 = sbr.rel (0) target = $region57
    $region56: #{tpu_custom_call.1} parent=1 // pred_region
      _
    $region57: #{tpu_custom_call.1} parent=1 // pred_fallthru
      _
    // Predicated region
    $region58: #{tpu_custom_call.1} parent=1 // pred_check
      _
    $region59: #{tpu_custom_call.1} parent=1 // pred_check_branch
      %52 = sbr.rel (0) target = $region61
    $region60: #{tpu_custom_call.1} parent=1 // pred_region
      _
    $region61: #{tpu_custom_call.1} parent=1 // pred_fallthru
      _
    %v53 = vld [vmem:[%s0] sm:$0xff]
    %v54 = vld [vmem:[%s0 + $0x8] sm:$0xf]
    %v55 = vld [vmem:[%s1] sm:$0xff]
    %v56 = vld [vmem:[%s1 + $0x8] sm:$0xff]
    %v57 = vld [vmem:[%s1 + $0x10] sm:$0xff]
    %v58 = vld [vmem:[%s1 + $0x18] sm:$0xff]
    %v59 = vld [vmem:[%s1 + $0x20] sm:$0xff]
    %v60 = vld [vmem:[%s1 + $0x28] sm:$0xff]
    %v61 = vld [vmem:[%s8] sm:$0xff]
    %v62 = vld [vmem:[%s8 + $0x8] sm:$0xff]
    %v63 = vld [vmem:[%s8 + $0x10] sm:$0xff]
    %v64 = vld [vmem:[%s8 + $0x18] sm:$0xff]
    %v65 = vld [vmem:[%s8 + $0x20] sm:$0xff]
    %v66 = vld [vmem:[%s8 + $0x28] sm:$0xff]
    %68 = vset.pattern.permute.xlu0 0
    %69 = vperm.xlu0 %68, %v61
    %v70 = vpop.permute.xlu0 %69
    %73 = vset.pattern.permute.xlu0 0
    %74 = vperm.xlu0 %73, %v62
    %v75 = vpop.permute.xlu0 %74
    %78 = vset.pattern.permute.xlu0 0
    %79 = vperm.xlu0 %78, %v63
    %v80 = vpop.permute.xlu0 %79
    %83 = vset.pattern.permute.xlu0 0
    %84 = vperm.xlu0 %83, %v64
    %v85 = vpop.permute.xlu0 %84
    %88 = vset.pattern.permute.xlu0 0
    %89 = vperm.xlu0 %88, %v65
    %v90 = vpop.permute.xlu0 %89
    %93 = vset.pattern.permute.xlu0 0
    %94 = vperm.xlu0 %93, %v66
    %v95 = vpop.permute.xlu0 %94
    %vm97 = vcmask 97280
    %v99 = vsel %vm97, %v55, 0
    %v102 = vsel %vm97, %v56, 0
    %v105 = vsel %vm97, %v57, 0
    %v108 = vsel %vm97, %v58, 0
    %v111 = vsel %vm97, %v59, 0
    %v114 = vsel %vm97, %v60, 0
    %vm116 = vcmask 1043456
    %v118 = vsel %vm116, %v54, 0
    %120 = vmatpush.msra.mxu0 0.0
    %121 = vmatpush.msra.mxu0 0.0
    %122 = vmatpush.msra.mxu0 0.0
    %123 = vmatpush.msra.mxu0 0.0
    %124 = vmatpush.msra.mxu0 0.0
    %125 = vmatpush.msra.mxu0 0.0
    %126 = vmatpush.msra.mxu0 0.0
    %127 = vmatpush.msra.mxu0 0.0
    %128 = vmatpush.msra.mxu0 0.0
    %129 = vmatpush.msra.mxu0 0.0
    %130 = vmatpush.msra.mxu0 0.0
    %131 = vmatpush.msra.mxu0 0.0
    %132 = vmatpush.msra.mxu0 0.0
    %133 = vmatpush.msra.mxu0 0.0
    %134 = vmatpush.msra.mxu0 %v118
    %135 = vmatpush.msra.mxu0 %v53
    %136 = vmatmul.f32.gmra.mxu0 %v99
    %v137 = vpop.f32.mrf.mxu0
    %v138 = vadd.f32 %v70, %v137
    %139 = vmatmul.f32.gmra.mxu0 %v102
    %v140 = vpop.f32.mrf.mxu0
    %v141 = vadd.f32 %v75, %v140
    %142 = vmatmul.f32.gmra.mxu0 %v105
    %v143 = vpop.f32.mrf.mxu0
    %v144 = vadd.f32 %v80, %v143
    %145 = vmatmul.f32.gmra.mxu0 %v108
    %v146 = vpop.f32.mrf.mxu0
    %v147 = vadd.f32 %v85, %v146
    %148 = vmatmul.f32.gmra.mxu0 %v111
    %v149 = vpop.f32.mrf.mxu0
    %v150 = vadd.f32 %v90, %v149
    %151 = vmatmul.f32.gmra.mxu0 %v114
    %v152 = vpop.f32.mrf.mxu0
    %v153 = vadd.f32 %v95, %v152
    %154 = vdwg.mxu0
    %v155 = vmax.f32 %v138, 0.0
    %v156 = vmax.f32 %v141, 0.0
    %v157 = vmax.f32 %v144, 0.0
    %v158 = vmax.f32 %v147, 0.0
    %v159 = vmax.f32 %v150, 0.0
    %v160 = vmax.f32 %v153, 0.0
    %v161 = vld [vmem:[%s2] sm:$0xff]
    %v162 = vld [vmem:[%s2 + $0x8] sm:$0xff]
    %v163 = vld [vmem:[%s2 + $0x10] sm:$0xff]
    %s164 = scalar_lea.vmem %s2, 24
    %v165 = vld [vmem:[%s164] sm:$0xff]
    %v166 = vld [vmem:[%s164 + $0x8] sm:$0xff]
    %v167 = vld [vmem:[%s164 + $0x10] sm:$0xff]
    %168 = vrot.lane.b32.xlu0 %v155, 127
    %v169 = vpop.permute.xlu0 %168
    %170 = vrot.lane.b32.xlu0 %v156, 127
    %v171 = vpop.permute.xlu0 %170
    %172 = vrot.lane.b32.xlu0 %v157, 127
    %v173 = vpop.permute.xlu0 %172
    %174 = vrot.lane.b32.xlu0 %v158, 127
    %v175 = vpop.permute.xlu0 %174
    %176 = vrot.lane.b32.xlu0 %v159, 127
    %v177 = vpop.permute.xlu0 %176
    %178 = vrot.lane.b32.xlu0 %v160, 127
    %v179 = vpop.permute.xlu0 %178
    %vm180 = vcmask 392192
    %v182 = vsel %vm180, %v165, 0
    %v185 = vsel %vm180, %v166, 0
    %v188 = vsel %vm180, %v167, 0
    %190 = vmatpush.msra.mxu0 0.0
    %191 = vmatpush.msra.mxu0 0.0
    %192 = vmatpush.msra.mxu0 0.0
    %193 = vmatpush.msra.mxu0 0.0
    %194 = vmatpush.msra.mxu0 0.0
    %195 = vmatpush.msra.mxu0 0.0
    %196 = vmatpush.msra.mxu0 0.0
    %197 = vmatpush.msra.mxu0 0.0
    %198 = vmatpush.msra.mxu0 0.0
    %199 = vmatpush.msra.mxu0 0.0
    %200 = vmatpush.msra.mxu0 %v179
    %201 = vmatpush.msra.mxu0 %v177
    %202 = vmatpush.msra.mxu0 %v175
    %203 = vmatpush.msra.mxu0 %v173
    %204 = vmatpush.msra.mxu0 %v171
    %205 = vmatpush.msra.mxu0 %v169
    %206 = vmatmul.f32.gmra.mxu0 %v182
    %v207 = vpop.f32.mrf.mxu0
    %v208 = vadd.f32 0.0, %v207
    %209 = vmatmul.f32.gmra.mxu0 %v185
    %v210 = vpop.f32.mrf.mxu0
    %v211 = vadd.f32 0.0, %v210
    %212 = vmatmul.f32.gmra.mxu0 %v188
    %v213 = vpop.f32.mrf.mxu0
    %v214 = vadd.f32 0.0, %v213
    %215 = vdwg.mxu0
    %v217 = vsel %vm180, %v161, 0
    %v220 = vsel %vm180, %v162, 0
    %v223 = vsel %vm180, %v163, 0
    %225 = vmatpush.msra.mxu0 0.0
    %226 = vmatpush.msra.mxu0 0.0
    %227 = vmatpush.msra.mxu0 0.0
    %228 = vmatpush.msra.mxu0 0.0
    %229 = vmatpush.msra.mxu0 0.0
    %230 = vmatpush.msra.mxu0 0.0
    %231 = vmatpush.msra.mxu0 0.0
    %232 = vmatpush.msra.mxu0 0.0
    %233 = vmatpush.msra.mxu0 0.0
    %234 = vmatpush.msra.mxu0 0.0
    %235 = vmatpush.msra.mxu0 %v160
    %236 = vmatpush.msra.mxu0 %v159
    %237 = vmatpush.msra.mxu0 %v158
    %238 = vmatpush.msra.mxu0 %v157
    %239 = vmatpush.msra.mxu0 %v156
    %240 = vmatpush.msra.mxu0 %v155
    %241 = vmatmul.f32.gmra.mxu0 %v217
    %v242 = vpop.f32.mrf.mxu0
    %v243 = vadd.f32 %v208, %v242
    %244 = vmatmul.f32.gmra.mxu0 %v220
    %v245 = vpop.f32.mrf.mxu0
    %v246 = vadd.f32 %v211, %v245
    %247 = vmatmul.f32.gmra.mxu0 %v223
    %v248 = vpop.f32.mrf.mxu0
    %v249 = vadd.f32 %v214, %v248
    %250 = vdwg.mxu0
    %s251 = scalar_lea.vmem %s2, 48
    %v252 = vld [vmem:[%s251] sm:$0xff]
    %v253 = vld [vmem:[%s251 + $0x8] sm:$0xff]
    %v254 = vld [vmem:[%s251 + $0x10] sm:$0xff]
    %255 = vrot.lane.b32.xlu0 %v155, 126
    %v256 = vpop.permute.xlu0 %255
    %257 = vrot.lane.b32.xlu0 %v156, 126
    %v258 = vpop.permute.xlu0 %257
    %259 = vrot.lane.b32.xlu0 %v157, 126
    %v260 = vpop.permute.xlu0 %259
    %261 = vrot.lane.b32.xlu0 %v158, 126
    %v262 = vpop.permute.xlu0 %261
    %263 = vrot.lane.b32.xlu0 %v159, 126
    %v264 = vpop.permute.xlu0 %263
    %265 = vrot.lane.b32.xlu0 %v160, 126
    %v266 = vpop.permute.xlu0 %265
    %v268 = vsel %vm180, %v252, 0
    %v271 = vsel %vm180, %v253, 0
    %v274 = vsel %vm180, %v254, 0
    %276 = vmatpush.msra.mxu0 0.0
    %277 = vmatpush.msra.mxu0 0.0
    %278 = vmatpush.msra.mxu0 0.0
    %279 = vmatpush.msra.mxu0 0.0
    %280 = vmatpush.msra.mxu0 0.0
    %281 = vmatpush.msra.mxu0 0.0
    %282 = vmatpush.msra.mxu0 0.0
    %283 = vmatpush.msra.mxu0 0.0
    %284 = vmatpush.msra.mxu0 0.0
    %285 = vmatpush.msra.mxu0 0.0
    %286 = vmatpush.msra.mxu0 %v266
    %287 = vmatpush.msra.mxu0 %v264
    %288 = vmatpush.msra.mxu0 %v262
    %289 = vmatpush.msra.mxu0 %v260
    %290 = vmatpush.msra.mxu0 %v258
    %291 = vmatpush.msra.mxu0 %v256
    %292 = vmatmul.f32.gmra.mxu0 %v268
    %v293 = vpop.f32.mrf.mxu0
    %v294 = vadd.f32 0.0, %v293
    %295 = vmatmul.f32.gmra.mxu0 %v271
    %v296 = vpop.f32.mrf.mxu0
    %v297 = vadd.f32 0.0, %v296
    %298 = vmatmul.f32.gmra.mxu0 %v274
    %v299 = vpop.f32.mrf.mxu0
    %v300 = vadd.f32 0.0, %v299
    %301 = vdwg.mxu0
    %v302 = vadd.f32 %v243, %v294
    %v303 = vadd.f32 %v246, %v297
    %v304 = vadd.f32 %v249, %v300
    %v305 = vld [vmem:[%s9] sm:$0xff]
    %v306 = vld [vmem:[%s9 + $0x8] sm:$0xff]
    %v307 = vld [vmem:[%s9 + $0x10] sm:$0xff]
    %309 = vset.pattern.permute.xlu0 0
    %310 = vperm.xlu0 %309, %v305
    %v311 = vpop.permute.xlu0 %310
    %314 = vset.pattern.permute.xlu0 0
    %315 = vperm.xlu0 %314, %v306
    %v316 = vpop.permute.xlu0 %315
    %319 = vset.pattern.permute.xlu0 0
    %320 = vperm.xlu0 %319, %v307
    %v321 = vpop.permute.xlu0 %320
    %v323 = vadd.f32 %v302, %v311
    %v324 = vadd.f32 %v303, %v316
    %v325 = vadd.f32 %v304, %v321
    %v326 = vmax.f32 %v323, 0.0
    %v327 = vmax.f32 %v324, 0.0
    %v328 = vmax.f32 %v325, 0.0
    %v329 = vld [vmem:[%s3] sm:$0xff]
    %v330 = vld [vmem:[%s3 + $0x8] sm:$0xf]
    %s331 = scalar_lea.vmem %s3, 16
    %v332 = vld [vmem:[%s331] sm:$0xff]
    %v333 = vld [vmem:[%s331 + $0x8] sm:$0xf]
    %334 = vrot.lane.b32.xlu0 %v326, 127
    %v335 = vpop.permute.xlu0 %334
    %336 = vrot.lane.b32.xlu0 %v327, 127
    %v337 = vpop.permute.xlu0 %336
    %338 = vrot.lane.b32.xlu0 %v328, 127
    %v339 = vpop.permute.xlu0 %338
    %vm340 = vcmask 195584
    %v342 = vsel %vm340, %v332, 0
    %v345 = vsel %vm340, %v333, 0
    %347 = vmatpush.msra.mxu0 0.0
    %348 = vmatpush.msra.mxu0 0.0
    %349 = vmatpush.msra.mxu0 0.0
    %350 = vmatpush.msra.mxu0 0.0
    %351 = vmatpush.msra.mxu0 0.0
    %352 = vmatpush.msra.mxu0 0.0
    %353 = vmatpush.msra.mxu0 0.0
    %354 = vmatpush.msra.mxu0 0.0
    %355 = vmatpush.msra.mxu0 0.0
    %356 = vmatpush.msra.mxu0 0.0
    %357 = vmatpush.msra.mxu0 0.0
    %358 = vmatpush.msra.mxu0 0.0
    %359 = vmatpush.msra.mxu0 0.0
    %360 = vmatpush.msra.mxu0 %v339
    %361 = vmatpush.msra.mxu0 %v337
    %362 = vmatpush.msra.mxu0 %v335
    %363 = vmatmul.f32.gmra.mxu0 %v342
    %v364 = vpop.f32.mrf.mxu0
    %v365 = vadd.f32 0.0, %v364
    %366 = vmatmul.f32.gmra.mxu0 %v345
    %v367 = vpop.f32.mrf.mxu0
    %v368 = vadd.f32 0.0, %v367
    %369 = vdwg.mxu0
    %v371 = vsel %vm340, %v329, 0
    %v374 = vsel %vm340, %v330, 0
    %376 = vmatpush.msra.mxu0 0.0
    %377 = vmatpush.msra.mxu0 0.0
    %378 = vmatpush.msra.mxu0 0.0
    %379 = vmatpush.msra.mxu0 0.0
    %380 = vmatpush.msra.mxu0 0.0
    %381 = vmatpush.msra.mxu0 0.0
    %382 = vmatpush.msra.mxu0 0.0
    %383 = vmatpush.msra.mxu0 0.0
    %384 = vmatpush.msra.mxu0 0.0
    %385 = vmatpush.msra.mxu0 0.0
    %386 = vmatpush.msra.mxu0 0.0
    %387 = vmatpush.msra.mxu0 0.0
    %388 = vmatpush.msra.mxu0 0.0
    %389 = vmatpush.msra.mxu0 %v328
    %390 = vmatpush.msra.mxu0 %v327
    %391 = vmatpush.msra.mxu0 %v326
    %392 = vmatmul.f32.gmra.mxu0 %v371
    %v393 = vpop.f32.mrf.mxu0
    %v394 = vadd.f32 %v365, %v393
    %395 = vmatmul.f32.gmra.mxu0 %v374
    %v396 = vpop.f32.mrf.mxu0
    %v397 = vadd.f32 %v368, %v396
    %398 = vdwg.mxu0
    %s399 = scalar_lea.vmem %s3, 32
    %v400 = vld [vmem:[%s399] sm:$0xff]
    %v401 = vld [vmem:[%s399 + $0x8] sm:$0xf]
    %402 = vrot.lane.b32.xlu0 %v326, 126
    %v403 = vpop.permute.xlu0 %402
    %404 = vrot.lane.b32.xlu0 %v327, 126
    %v405 = vpop.permute.xlu0 %404
    %406 = vrot.lane.b32.xlu0 %v328, 126
    %v407 = vpop.permute.xlu0 %406
    %v409 = vsel %vm340, %v400, 0
    %v412 = vsel %vm340, %v401, 0
    %414 = vmatpush.msra.mxu0 0.0
    %415 = vmatpush.msra.mxu0 0.0
    %416 = vmatpush.msra.mxu0 0.0
    %417 = vmatpush.msra.mxu0 0.0
    %418 = vmatpush.msra.mxu0 0.0
    %419 = vmatpush.msra.mxu0 0.0
    %420 = vmatpush.msra.mxu0 0.0
    %421 = vmatpush.msra.mxu0 0.0
    %422 = vmatpush.msra.mxu0 0.0
    %423 = vmatpush.msra.mxu0 0.0
    %424 = vmatpush.msra.mxu0 0.0
    %425 = vmatpush.msra.mxu0 0.0
    %426 = vmatpush.msra.mxu0 0.0
    %427 = vmatpush.msra.mxu0 %v407
    %428 = vmatpush.msra.mxu0 %v405
    %429 = vmatpush.msra.mxu0 %v403
    %430 = vmatmul.f32.gmra.mxu0 %v409
    %v431 = vpop.f32.mrf.mxu0
    %v432 = vadd.f32 0.0, %v431
    %433 = vmatmul.f32.gmra.mxu0 %v412
    %v434 = vpop.f32.mrf.mxu0
    %v435 = vadd.f32 0.0, %v434
    %436 = vdwg.mxu0
    %v437 = vadd.f32 %v394, %v432
    %v438 = vadd.f32 %v397, %v435
    %v439 = vld [vmem:[%s10] sm:$0xff]
    %v440 = vld [vmem:[%s10 + $0x8] sm:$0xf]
    %442 = vset.pattern.permute.xlu0 0
    %443 = vperm.xlu0 %442, %v439
    %v444 = vpop.permute.xlu0 %443
    %447 = vset.pattern.permute.xlu0 0
    %448 = vperm.xlu0 %447, %v440
    %v449 = vpop.permute.xlu0 %448
    %v451 = vadd.f32 %v437, %v444
    %v452 = vadd.f32 %v438, %v449
    %v453 = vmax.f32 %v451, 0.0
    %v454 = vmax.f32 %v452, 0.0
    %v455 = vld [vmem:[%s4] sm:$0xff]
    %v456 = vld [vmem:[%s4 + $0x8] sm:$0xff]
    %v457 = vld [vmem:[%s4 + $0x10] sm:$0xff]
    %v458 = vld [vmem:[%s4 + $0x18] sm:$0xff]
    %v459 = vld [vmem:[%s4 + $0x20] sm:$0xff]
    %v460 = vld [vmem:[%s4 + $0x28] sm:$0xff]
    %v461 = vld [vmem:[%s4 + $0x30] sm:$0xff]
    %v462 = vld [vmem:[%s4 + $0x38] sm:$0xff]
    %v463 = vld [vmem:[%s4 + $0x40] sm:$0xff]
    %v464 = vld [vmem:[%s4 + $0x48] sm:$0xff]
    %v465 = vld [vmem:[%s4 + $0x50] sm:$0xff]
    %v466 = vld [vmem:[%s4 + $0x58] sm:$0xff]
    %v467 = vld [vmem:[%s11] sm:$0xff]
    %v468 = vld [vmem:[%s11 + $0x8] sm:$0xff]
    %v469 = vld [vmem:[%s11 + $0x10] sm:$0xff]
    %v470 = vld [vmem:[%s11 + $0x18] sm:$0xff]
    %v471 = vld [vmem:[%s11 + $0x20] sm:$0xff]
    %v472 = vld [vmem:[%s11 + $0x28] sm:$0xff]
    %v473 = vld [vmem:[%s11 + $0x30] sm:$0xff]
    %v474 = vld [vmem:[%s11 + $0x38] sm:$0xff]
    %v475 = vld [vmem:[%s11 + $0x40] sm:$0xff]
    %v476 = vld [vmem:[%s11 + $0x48] sm:$0xff]
    %v477 = vld [vmem:[%s11 + $0x50] sm:$0xff]
    %v478 = vld [vmem:[%s11 + $0x58] sm:$0xff]
    %480 = vset.pattern.permute.xlu0 0
    %481 = vperm.xlu0 %480, %v467
    %v482 = vpop.permute.xlu0 %481
    %485 = vset.pattern.permute.xlu0 0
    %486 = vperm.xlu0 %485, %v468
    %v487 = vpop.permute.xlu0 %486
    %490 = vset.pattern.permute.xlu0 0
    %491 = vperm.xlu0 %490, %v469
    %v492 = vpop.permute.xlu0 %491
    %495 = vset.pattern.permute.xlu0 0
    %496 = vperm.xlu0 %495, %v470
    %v497 = vpop.permute.xlu0 %496
    %500 = vset.pattern.permute.xlu0 0
    %501 = vperm.xlu0 %500, %v471
    %v502 = vpop.permute.xlu0 %501
    %505 = vset.pattern.permute.xlu0 0
    %506 = vperm.xlu0 %505, %v472
    %v507 = vpop.permute.xlu0 %506
    %510 = vset.pattern.permute.xlu0 0
    %511 = vperm.xlu0 %510, %v473
    %v512 = vpop.permute.xlu0 %511
    %515 = vset.pattern.permute.xlu0 0
    %516 = vperm.xlu0 %515, %v474
    %v517 = vpop.permute.xlu0 %516
    %520 = vset.pattern.permute.xlu0 0
    %521 = vperm.xlu0 %520, %v475
    %v522 = vpop.permute.xlu0 %521
    %525 = vset.pattern.permute.xlu0 0
    %526 = vperm.xlu0 %525, %v476
    %v527 = vpop.permute.xlu0 %526
    %530 = vset.pattern.permute.xlu0 0
    %531 = vperm.xlu0 %530, %v477
    %v532 = vpop.permute.xlu0 %531
    %535 = vset.pattern.permute.xlu0 0
    %536 = vperm.xlu0 %535, %v478
    %v537 = vpop.permute.xlu0 %536
    %v540 = vsel %vm97, %v455, 0
    %v543 = vsel %vm97, %v456, 0
    %v546 = vsel %vm97, %v457, 0
    %v549 = vsel %vm97, %v458, 0
    %v552 = vsel %vm97, %v459, 0
    %v555 = vsel %vm97, %v460, 0
    %v558 = vsel %vm97, %v461, 0
    %v561 = vsel %vm97, %v462, 0
    %v564 = vsel %vm97, %v463, 0
    %v567 = vsel %vm97, %v464, 0
    %v570 = vsel %vm97, %v465, 0
    %v573 = vsel %vm97, %v466, 0
    %v576 = vsel %vm116, %v454, 0
    %578 = vmatpush.msra.mxu0 0.0
    %579 = vmatpush.msra.mxu0 0.0
    %580 = vmatpush.msra.mxu0 0.0
    %581 = vmatpush.msra.mxu0 0.0
    %582 = vmatpush.msra.mxu0 0.0
    %583 = vmatpush.msra.mxu0 0.0
    %584 = vmatpush.msra.mxu0 0.0
    %585 = vmatpush.msra.mxu0 0.0
    %586 = vmatpush.msra.mxu0 0.0
    %587 = vmatpush.msra.mxu0 0.0
    %588 = vmatpush.msra.mxu0 0.0
    %589 = vmatpush.msra.mxu0 0.0
    %590 = vmatpush.msra.mxu0 0.0
    %591 = vmatpush.msra.mxu0 0.0
    %592 = vmatpush.msra.mxu0 %v576
    %593 = vmatpush.msra.mxu0 %v453
    %594 = vmatmul.f32.gmra.mxu0 %v540
    %v595 = vpop.f32.mrf.mxu0
    %v596 = vadd.f32 %v482, %v595
    %597 = vmatmul.f32.gmra.mxu0 %v543
    %v598 = vpop.f32.mrf.mxu0
    %v599 = vadd.f32 %v487, %v598
    %600 = vmatmul.f32.gmra.mxu0 %v546
    %v601 = vpop.f32.mrf.mxu0
    %v602 = vadd.f32 %v492, %v601
    %603 = vmatmul.f32.gmra.mxu0 %v549
    %v604 = vpop.f32.mrf.mxu0
    %v605 = vadd.f32 %v497, %v604
    %606 = vmatmul.f32.gmra.mxu0 %v552
    %v607 = vpop.f32.mrf.mxu0
    %v608 = vadd.f32 %v502, %v607
    %609 = vmatmul.f32.gmra.mxu0 %v555
    %v610 = vpop.f32.mrf.mxu0
    %v611 = vadd.f32 %v507, %v610
    %612 = vmatmul.f32.gmra.mxu0 %v558
    %v613 = vpop.f32.mrf.mxu0
    %v614 = vadd.f32 %v512, %v613
    %615 = vmatmul.f32.gmra.mxu0 %v561
    %v616 = vpop.f32.mrf.mxu0
    %v617 = vadd.f32 %v517, %v616
    %618 = vmatmul.f32.gmra.mxu0 %v564
    %v619 = vpop.f32.mrf.mxu0
    %v620 = vadd.f32 %v522, %v619
    %621 = vmatmul.f32.gmra.mxu0 %v567
    %v622 = vpop.f32.mrf.mxu0
    %v623 = vadd.f32 %v527, %v622
    %624 = vmatmul.f32.gmra.mxu0 %v570
    %v625 = vpop.f32.mrf.mxu0
    %v626 = vadd.f32 %v532, %v625
    %627 = vmatmul.f32.gmra.mxu0 %v573
    %v628 = vpop.f32.mrf.mxu0
    %v629 = vadd.f32 %v537, %v628
    %630 = vdwg.mxu0
    %v631 = vmax.f32 %v596, 0.0
    %v632 = vmax.f32 %v599, 0.0
    %v633 = vmax.f32 %v602, 0.0
    %v634 = vmax.f32 %v605, 0.0
    %v635 = vmax.f32 %v608, 0.0
    %v636 = vmax.f32 %v611, 0.0
    %v637 = vmax.f32 %v614, 0.0
    %v638 = vmax.f32 %v617, 0.0
    %v639 = vmax.f32 %v620, 0.0
    %v640 = vmax.f32 %v623, 0.0
    %v641 = vmax.f32 %v626, 0.0
    %v642 = vmax.f32 %v629, 0.0
    %v643 = vld [vmem:[%s5] sm:$0xff]
    %v644 = vld [vmem:[%s5 + $0x8] sm:$0xff]
    %v645 = vld [vmem:[%s5 + $0x10] sm:$0xff]
    %v646 = vld [vmem:[%s5 + $0x18] sm:$0xff]
    %v647 = vld [vmem:[%s5 + $0x20] sm:$0xff]
    %v648 = vld [vmem:[%s5 + $0x28] sm:$0xff]
    %v649 = vld [vmem:[%s12] sm:$0xff]
    %v650 = vld [vmem:[%s12 + $0x8] sm:$0xff]
    %v651 = vld [vmem:[%s12 + $0x10] sm:$0xff]
    %v652 = vld [vmem:[%s12 + $0x18] sm:$0xff]
    %v653 = vld [vmem:[%s12 + $0x20] sm:$0xff]
    %v654 = vld [vmem:[%s12 + $0x28] sm:$0xff]
    %656 = vset.pattern.permute.xlu0 0
    %657 = vperm.xlu0 %656, %v649
    %v658 = vpop.permute.xlu0 %657
    %661 = vset.pattern.permute.xlu0 0
    %662 = vperm.xlu0 %661, %v650
    %v663 = vpop.permute.xlu0 %662
    %666 = vset.pattern.permute.xlu0 0
    %667 = vperm.xlu0 %666, %v651
    %v668 = vpop.permute.xlu0 %667
    %671 = vset.pattern.permute.xlu0 0
    %672 = vperm.xlu0 %671, %v652
    %v673 = vpop.permute.xlu0 %672
    %676 = vset.pattern.permute.xlu0 0
    %677 = vperm.xlu0 %676, %v653
    %v678 = vpop.permute.xlu0 %677
    %681 = vset.pattern.permute.xlu0 0
    %682 = vperm.xlu0 %681, %v654
    %v683 = vpop.permute.xlu0 %682
    %vm685 = vcmask 785408
    %v687 = vsel %vm685, %v643, 0
    %v690 = vsel %vm685, %v644, 0
    %v693 = vsel %vm685, %v645, 0
    %v696 = vsel %vm685, %v646, 0
    %v699 = vsel %vm685, %v647, 0
    %v702 = vsel %vm685, %v648, 0
    %704 = vmatpush.msra.mxu0 0.0
    %705 = vmatpush.msra.mxu0 0.0
    %706 = vmatpush.msra.mxu0 0.0
    %707 = vmatpush.msra.mxu0 0.0
    %708 = vmatpush.msra.mxu0 %v642
    %709 = vmatpush.msra.mxu0 %v641
    %710 = vmatpush.msra.mxu0 %v640
    %711 = vmatpush.msra.mxu0 %v639
    %712 = vmatpush.msra.mxu0 %v638
    %713 = vmatpush.msra.mxu0 %v637
    %714 = vmatpush.msra.mxu0 %v636
    %715 = vmatpush.msra.mxu0 %v635
    %716 = vmatpush.msra.mxu0 %v634
    %717 = vmatpush.msra.mxu0 %v633
    %718 = vmatpush.msra.mxu0 %v632
    %719 = vmatpush.msra.mxu0 %v631
    %720 = vmatmul.f32.gmra.mxu0 %v687
    %v721 = vpop.f32.mrf.mxu0
    %v722 = vadd.f32 %v658, %v721
    %723 = vmatmul.f32.gmra.mxu0 %v690
    %v724 = vpop.f32.mrf.mxu0
    %v725 = vadd.f32 %v663, %v724
    %726 = vmatmul.f32.gmra.mxu0 %v693
    %v727 = vpop.f32.mrf.mxu0
    %v728 = vadd.f32 %v668, %v727
    %729 = vmatmul.f32.gmra.mxu0 %v696
    %v730 = vpop.f32.mrf.mxu0
    %v731 = vadd.f32 %v673, %v730
    %732 = vmatmul.f32.gmra.mxu0 %v699
    %v733 = vpop.f32.mrf.mxu0
    %v734 = vadd.f32 %v678, %v733
    %735 = vmatmul.f32.gmra.mxu0 %v702
    %v736 = vpop.f32.mrf.mxu0
    %v737 = vadd.f32 %v683, %v736
    %738 = vdwg.mxu0
    %v739 = vmax.f32 %v722, 0.0
    %v740 = vmax.f32 %v725, 0.0
    %v741 = vmax.f32 %v728, 0.0
    %v742 = vmax.f32 %v731, 0.0
    %v743 = vmax.f32 %v734, 0.0
    %v744 = vmax.f32 %v737, 0.0
    %v745 = vld [vmem:[%s6] sm:$0xff]
    %v746 = vld [vmem:[%s6 + $0x8] sm:$0xff]
    %v747 = vld [vmem:[%s6 + $0x10] sm:$0xff]
    %v748 = vld [vmem:[%s13] sm:$0xff]
    %v749 = vld [vmem:[%s13 + $0x8] sm:$0xff]
    %v750 = vld [vmem:[%s13 + $0x10] sm:$0xff]
    %752 = vset.pattern.permute.xlu0 0
    %753 = vperm.xlu0 %752, %v748
    %v754 = vpop.permute.xlu0 %753
    %757 = vset.pattern.permute.xlu0 0
    %758 = vperm.xlu0 %757, %v749
    %v759 = vpop.permute.xlu0 %758
    %762 = vset.pattern.permute.xlu0 0
    %763 = vperm.xlu0 %762, %v750
    %v764 = vpop.permute.xlu0 %763
    %v767 = vsel %vm180, %v745, 0
    %v770 = vsel %vm180, %v746, 0
    %v773 = vsel %vm180, %v747, 0
    %775 = vmatpush.msra.mxu0 0.0
    %776 = vmatpush.msra.mxu0 0.0
    %777 = vmatpush.msra.mxu0 0.0
    %778 = vmatpush.msra.mxu0 0.0
    %779 = vmatpush.msra.mxu0 0.0
    %780 = vmatpush.msra.mxu0 0.0
    %781 = vmatpush.msra.mxu0 0.0
    %782 = vmatpush.msra.mxu0 0.0
    %783 = vmatpush.msra.mxu0 0.0
    %784 = vmatpush.msra.mxu0 0.0
    %785 = vmatpush.msra.mxu0 %v744
    %786 = vmatpush.msra.mxu0 %v743
    %787 = vmatpush.msra.mxu0 %v742
    %788 = vmatpush.msra.mxu0 %v741
    %789 = vmatpush.msra.mxu0 %v740
    %790 = vmatpush.msra.mxu0 %v739
    %791 = vmatmul.f32.gmra.mxu0 %v767
    %v792 = vpop.f32.mrf.mxu0
    %v793 = vadd.f32 %v754, %v792
    %794 = vmatmul.f32.gmra.mxu0 %v770
    %v795 = vpop.f32.mrf.mxu0
    %v796 = vadd.f32 %v759, %v795
    %797 = vmatmul.f32.gmra.mxu0 %v773
    %v798 = vpop.f32.mrf.mxu0
    %v799 = vadd.f32 %v764, %v798
    %800 = vdwg.mxu0
    %v801 = vmax.f32 %v793, 0.0
    %v802 = vmax.f32 %v796, 0.0
    %v803 = vmax.f32 %v799, 0.0
    %v804 = vld [vmem:[%s7] sm:$0xff]
    %v805 = vld [vmem:[%s7 + $0x8] sm:$0xff]
    %v806 = vld [vmem:[%s7 + $0x10] sm:$0xff]
    %808 = vset.pattern.permute.xlu0 0
    %809 = vperm.xlu0 %808, %v804
    %v810 = vpop.permute.xlu0 %809
    %813 = vset.pattern.permute.xlu0 0
    %814 = vperm.xlu0 %813, %v805
    %v815 = vpop.permute.xlu0 %814
    %818 = vset.pattern.permute.xlu0 0
    %819 = vperm.xlu0 %818, %v806
    %v820 = vpop.permute.xlu0 %819
    %v822 = vmul.f32 %v801, %v810
    %v823 = vmul.f32 %v802, %v815
    %v824 = vmul.f32 %v803, %v820
    %v825 = vadd.f32 %v822, %v823
    %v826 = vadd.f32 %v825, %v824
    %v827 = vrot.slane %v826, 4
    %v828 = vadd.f32 %v826, %v827
    %v829 = vrot.slane %v828, 2
    %v830 = vadd.f32 %v828, %v829
    %v831 = vrot.slane %v830, 1
    %v832 = vadd.f32 %v830, %v831
    %v833 = vld [vmem:[#allocation2] sm:$0x1]
    %835 = vset.pattern.permute.xlu0 0
    %836 = vperm.xlu0 %835, %v833
    %v837 = vpop.permute.xlu0 %836
    %v839 = vperm.slane %v837, 0
    %v840 = vadd.f32 %v832, %v839
    %841 = vst [vmem:[#allocation3] sm:$0x1] %v840
    // Predicated region
    $region62: #{tpu_custom_call.1} parent=1 // pred_check
      _
    $region63: #{tpu_custom_call.1} parent=1 // pred_check_branch
      %843 = sbr.rel (0) target = $region65
    $region64: #{tpu_custom_call.1} parent=1 // pred_region
      %845 = vsyncadd [#allocation4], 0
      %s847 = sshll.u32 [#allocation3], 4
      %s848 = int_to_ptr.vmem [resolvable:$true] %s847
      %s849 = sshll.u32 %s15, 4
      %s850 = int_to_ptr.hbm [resolvable:$true] %s849
      %852 = dma.vmem_to_hbm [thread:$0]  %s848, 16, %s850, [#allocation4]
    $region65: #{tpu_custom_call.1} parent=1 // pred_fallthru
      _
    // Predicated region
    $region66: #{tpu_custom_call.1} parent=1 // pred_check
      _
    $region67: #{tpu_custom_call.1} parent=1 // pred_check_branch
      %854 = sbr.rel (0) target = $region69
    $region68: #{tpu_custom_call.1} parent=1 // pred_region
      %856 = dma.done [#allocation4], 16
    $region69: #{tpu_custom_call.1} parent=1 // pred_fallthru
      _
    %857 = vsyncpa [#allocation4], 1

</llo_original>
